<compile_context>
chip_gen: v5e
topology: v5e:2x2
jax: 0.10.0
libtpu: 0.0.40
codegen_flags: <defaults>
</compile_context>

<pallas_src>
import functools

import jax
import jax.numpy as jnp
from jax.experimental import pallas as pl
from jax.experimental.pallas import tpu as pltpu


def _round8(v):
    return (v + 7) // 8 * 8


def _token_init_kernel(x_ref, w_ref, b_ref, out_ref, xpad_ref, *,
                       H, W, Cb, bb, k, s, Ho, Wo, flat_out, fast):
    """Fused depthwise 3x3 conv (padding=1) + AvgPool2d(k, s).

    x_ref:    (bb, H, W, Cb)      NHWC input block
    w_ref:    (3, 3, Cb)          depthwise weights, pre-scaled by 1/(k*k), f32
    b_ref:    (1, 1, Cb)          conv bias, f32
    out_ref:  (bb, Ho, Wo*Cb) if flat_out else (bb, Ho, Wo, Cb)
    xpad_ref: (bb, H+2, W+2, Cb)  f32 VMEM scratch, zero-padded tile
    """
    f32 = jnp.float32

    # ---- zero-pad the input block into VMEM scratch (single cast to f32) ----
    xpad_ref[:, 0:1, :, :] = jnp.zeros((bb, 1, W + 2, Cb), f32)
    xpad_ref[:, H + 1:H + 2, :, :] = jnp.zeros((bb, 1, W + 2, Cb), f32)
    xpad_ref[:, :, 0:1, :] = jnp.zeros((bb, H + 2, 1, Cb), f32)
    xpad_ref[:, :, W + 1:W + 2, :] = jnp.zeros((bb, H + 2, 1, Cb), f32)
    # TODO(synk): this interior store sits at sublane offset 1 (masked stores);
    # an aligned store + pltpu.roll-based left-border view would remove that
    # pass, at the cost of an extra relayout op class in the kernel.
    xpad_ref[:, 1:H + 1, 1:W + 1, :] = x_ref[...].astype(f32)

    xp = xpad_ref[...]                     # (bb, H+2, W+2, Cb) f32
    wv = w_ref[...]                        # (3, 3, Cb) f32, already * 1/(k*k)
    Wp = W + 2

    if fast:
        # Standard configs: k == s >= 2, H = Ho*s, W = Wo*s.
        # Stage 1: k-row box sums at stride s for row offsets dy = 0, 1, 2.
        # Leading-axis reshape makes every row selection free (untiled axis).
        v0 = xp[:, 0:H, :, :].reshape(bb, Ho, s, Wp, Cb)       # rows oh*s + r
        v2 = xp[:, 2:H + 2, :, :].reshape(bb, Ho, s, Wp, Cb)   # rows oh*s + 2 + r
        b0 = jnp.sum(v0, axis=2)                               # rows oh*s   .. +k-1
        b1 = b0 - v0[:, :, 0, :, :] + v2[:, :, s - 2, :, :]    # rows oh*s+1 .. +k
        b2 = b1 - v0[:, :, 1, :, :] + v2[:, :, s - 1, :, :]    # rows oh*s+2 .. +k+1
        rows = (b0, b1, b2)                                    # (bb, Ho, Wp, Cb)

        # Stage 2: dx-weighted 1x3 combine at (Ho, W), then k-box pool along W.
        acc = jnp.zeros((bb, Ho, W, Cb), f32)
        for dy in range(3):
            bdy = rows[dy]
            for dx in range(3):
                acc = acc + bdy[:, :, dx:dx + W, :] * wv[dy, dx, :]
        pooled = acc.reshape(bb, Ho, Wo, s, Cb).sum(axis=3)    # (bb, Ho, Wo, Cb)
    else:
        # Generic fallback (k != s or k == 1): 9-tap conv + explicit windows.
        acc = jnp.zeros((bb, H, W, Cb), f32)
        for dx in range(3):
            xs = xp[:, :, dx:dx + W, :]
            for dy in range(3):
                acc = acc + xs[:, dy:dy + H, :, :] * wv[dy, dx, :]
        rows_l = []
        for oh in range(Ho):
            band = acc[:, oh * s:oh * s + k, :, :].sum(axis=1)
            cols = [band[:, ow * s:ow * s + k, :].sum(axis=1) for ow in range(Wo)]
            rows_l.append(jnp.stack(cols, axis=1))
        pooled = jnp.stack(rows_l, axis=1)                     # (bb, Ho, Wo, Cb)

    res = (pooled + b_ref[...]).astype(out_ref.dtype)

    if flat_out:
        out_ref[...] = res.reshape(bb, Ho, Wo * Cb)            # lane-dense store
    else:
        out_ref[...] = res


def token_initializer_forward(x_nchw, conv_w, conv_b, *,
                              input_resolution, window_size, ct_size):
    """Matches TokenInitializer.forward (PyTorch, NCHW input)."""
    B, C, H, W = x_nchw.shape
    assert H == input_resolution and W == input_resolution

    output_size = int(ct_size * input_resolution / window_size)
    stride_size = int(input_resolution / output_size)
    kernel_size = input_resolution - (output_size - 1) * stride_size
    Ho = Wo = output_size
    k, s = kernel_size, stride_size
    fast = (k == s) and (s >= 2) and (H == Ho * s) and (W == Wo * s)

    # NCHW -> NHWC so channels sit on the 128-lane axis.
    # TODO(synk): fuse this transpose into the kernel (read (bb,Cb,H,W) blocks,
    # transpose on the idle XLU) to drop one HBM round-trip; biggest win on v5e.
    x_nhwc = jnp.transpose(x_nchw, (0, 2, 3, 1))

    # Fold 1/(k*k) into the depthwise weights; bias is added after the average.
    wp = conv_w.astype(jnp.float32) * (1.0 / float(k * k))     # (3, 3, C)
    bp = conv_b.astype(jnp.float32).reshape(1, 1, C)

    # Channel blocking: 128-lane blocks for real FasterViT widths.
    Cb = 128 if (C > 128 and C % 128 == 0) else C
    ncb = C // Cb

    # Batch blocking: amortize per-step overhead, stay under a VMEM budget that
    # is safe with default scoped VMEM on v5e/v6e/v7x, and keep >=2 parallel
    # grid steps when possible (v7x shards parallel axes across its 2 TCs).
    itemsize = jnp.dtype(x_nhwc.dtype).itemsize
    wpad = _round8(W + 2)
    per_img = (2 * H * W * Cb * itemsize                 # double-buffered input
               + 2 * (H + 2) * wpad * Cb * 4             # f32 scratch + xp value
               + 4 * Ho * wpad * Cb * 4                  # b0..b2 + acc
               + 2 * Ho * Wo * Cb * itemsize)            # double-buffered output
    budget = 10 << 20
    bb = 1
    for cand in range(1, B + 1):
        if B % cand:
            continue
        if cand * per_img > budget:
            continue
        if (B // cand) * ncb < min(2, B * ncb):
            continue
        bb = cand
    nbb = B // bb
    flat_out = (ncb == 1)

    kernel = functools.partial(
        _token_init_kernel,
        H=H, W=W, Cb=Cb, bb=bb, k=k, s=s, Ho=Ho, Wo=Wo,
        flat_out=flat_out, fast=fast)

    if flat_out:
        out_shape = jax.ShapeDtypeStruct((B, Ho, Wo * C), x_nchw.dtype)
        out_spec = pl.BlockSpec((bb, Ho, Wo * Cb), lambda b, c: (b, 0, 0))
    else:
        out_shape = jax.ShapeDtypeStruct((B, Ho, Wo, C), x_nchw.dtype)
        out_spec = pl.BlockSpec((bb, Ho, Wo, Cb), lambda b, c: (b, 0, 0, c))

    pooled = pl.pallas_call(
        kernel,
        out_shape=out_shape,
        grid=(nbb, ncb),
        in_specs=[
            pl.BlockSpec((bb, H, W, Cb), lambda b, c: (b, 0, 0, c)),
            pl.BlockSpec((3, 3, Cb), lambda b, c: (0, 0, c)),
            pl.BlockSpec((1, 1, Cb), lambda b, c: (0, 0, c)),
        ],
        out_specs=out_spec,
        scratch_shapes=[pltpu.VMEM((bb, H + 2, W + 2, Cb), jnp.float32)],
        compiler_params=pltpu.CompilerParams(
            dimension_semantics=("parallel", "parallel"),
            vmem_limit_bytes=32 * 1024 * 1024),
    )(x_nhwc, wp, bp)

    if flat_out:
        pooled = pooled.reshape(B, Ho, Wo, C)   # free row-major view

    # Carrier-token rearrangement (pure layout glue; mirrors the PyTorch
    # view/permute/reshape, expressed in NHWC).
    ws = ct_size
    ct = pooled.reshape(B, Ho // ws, ws, Wo // ws, ws, C)
    ct = jnp.transpose(ct, (0, 1, 3, 2, 4, 5))        # (B, Ho//ws, Wo//ws, ws, ws, C)
    ct = ct.reshape(-1, Ho * Wo, C)                   # (B, Ho*Wo, C)
    return ct


def _reference(x_nchw, conv_w, conv_b, *, input_resolution, window_size, ct_size):
    """Pure-JAX reference reproducing the PyTorch forward exactly."""
    B, C, H, W = x_nchw.shape
    w_oihw = jnp.transpose(conv_w, (2, 0, 1))[:, None, :, :]   # (C, 1, 3, 3)
    y = jax.lax.conv_general_dilated(
        x_nchw, w_oihw, window_strides=(1, 1), padding=((1, 1), (1, 1)),
        feature_group_count=C, dimension_numbers=('NCHW', 'OIHW', 'NCHW'))
    y = y + conv_b[None, :, None, None]

    output_size = int(ct_size * input_resolution / window_size)
    s = int(input_resolution / output_size)
    k = input_resolution - (output_size - 1) * s
    y = jax.lax.reduce_window(y, 0.0, jax.lax.add,
                              (1, 1, k, k), (1, 1, s, s), 'VALID') / float(k * k)

    Bc, Cc, Hh, Ww = y.shape
    ws = ct_size
    ct = y.reshape(Bc, Cc, Hh // ws, ws, Ww // ws, ws)
    ct = jnp.transpose(ct, (0, 2, 4, 3, 5, 1)).reshape(-1, Hh * Ww, Cc)
    return ct


if __name__ == "__main__":
    # Small, module-consistent shapes.
    B, dim = 2, 32
    input_resolution, window_size, ct_size = 16, 8, 2

    key = jax.random.PRNGKey(0)
    kx, kw, kb = jax.random.split(key, 3)
    x = jax.random.normal(kx, (B, dim, input_resolution, input_resolution), jnp.float32)
    # Depthwise conv params: torch weight (dim, 1, 3, 3) stored here as (3, 3, dim).
    conv_w = jax.random.normal(kw, (3, 3, dim), jnp.float32) * 0.1
    conv_b = jax.random.normal(kb, (dim,), jnp.float32) * 0.1

    out = token_initializer_forward(
        x, conv_w, conv_b,
        input_resolution=input_resolution, window_size=window_size, ct_size=ct_size)
    out = jax.block_until_ready(out)

    ref = _reference(
        x, conv_w, conv_b,
        input_resolution=input_resolution, window_size=window_size, ct_size=ct_size)
    ref = jax.block_until_ready(ref)

    assert out.shape == ref.shape, (out.shape, ref.shape)
    assert jnp.allclose(out, ref, atol=1e-4, rtol=1e-4), float(jnp.max(jnp.abs(out - ref)))
    print("KERNEL_OK")
</pallas_src>

<mosaic_0001>
module attributes {stable_mosaic.version = 11 : i64} {
  func.func @_token_init_kernel(%arg0: i32, %arg1: i32, %arg2: memref<1x16x16x32xf32, #tpu.memory_space<vmem>>, %arg3: memref<3x3x32xf32, #tpu.memory_space<vmem>>, %arg4: memref<1x1x32xf32, #tpu.memory_space<vmem>>, %arg5: memref<1x4x128xf32, #tpu.memory_space<vmem>>, %arg6: memref<1x18x18x32xf32, #tpu.memory_space<vmem>>) attributes {dimension_semantics = [#tpu.dimension_semantics<parallel>, #tpu.dimension_semantics<parallel>], iteration_bounds = array<i64: 2, 1>, scalar_prefetch = 0 : i64, scratch_operands = 1 : i64, tpu.core_type = #tpu.core_type<tc>, window_params = [{transform_indices = @transform_0, window_bounds = array<i64: 1, 16, 16, 32>}, {transform_indices = @transform_1, window_bounds = array<i64: 3, 3, 32>}, {transform_indices = @transform_2, window_bounds = array<i64: 1, 1, 32>}, {transform_indices = @transform_3, window_bounds = array<i64: 1, 4, 128>}]} {
    %cst = arith.constant 0.000000e+00 : f32
    %0 = vector.broadcast %cst : f32 to vector<1x1x18x32xf32>
    %c0 = arith.constant 0 : index
    %c0_0 = arith.constant 0 : index
    %c0_1 = arith.constant 0 : index
    %c0_2 = arith.constant 0 : index
    %1 = vector.load %arg6[%c0, %c0_0, %c0_1, %c0_2] : memref<1x18x18x32xf32, #tpu.memory_space<vmem>>, vector<1x1x18x32xf32>
    tpu.vector_store %arg6[%c0, %c0_0, %c0_1, %c0_2], %0 {strides = array<i32>} : memref<1x18x18x32xf32, #tpu.memory_space<vmem>>, vector<1x1x18x32xf32>,
    %cst_3 = arith.constant 0.000000e+00 : f32
    %2 = vector.broadcast %cst_3 : f32 to vector<1x1x18x32xf32>
    %c0_4 = arith.constant 0 : index
    %c17 = arith.constant 17 : index
    %c0_5 = arith.constant 0 : index
    %c0_6 = arith.constant 0 : index
    %3 = vector.load %arg6[%c0_4, %c17, %c0_5, %c0_6] : memref<1x18x18x32xf32, #tpu.memory_space<vmem>>, vector<1x1x18x32xf32>
    tpu.vector_store %arg6[%c0_4, %c17, %c0_5, %c0_6], %2 {strides = array<i32>} : memref<1x18x18x32xf32, #tpu.memory_space<vmem>>, vector<1x1x18x32xf32>,
    %cst_7 = arith.constant 0.000000e+00 : f32
    %4 = vector.broadcast %cst_7 : f32 to vector<1x18x1x32xf32>
    %c0_8 = arith.constant 0 : index
    %c0_9 = arith.constant 0 : index
    %c0_10 = arith.constant 0 : index
    %c0_11 = arith.constant 0 : index
    %5 = vector.load %arg6[%c0_8, %c0_9, %c0_10, %c0_11] : memref<1x18x18x32xf32, #tpu.memory_space<vmem>>, vector<1x18x1x32xf32>
    tpu.vector_store %arg6[%c0_8, %c0_9, %c0_10, %c0_11], %4 {strides = array<i32>} : memref<1x18x18x32xf32, #tpu.memory_space<vmem>>, vector<1x18x1x32xf32>,
    %cst_12 = arith.constant 0.000000e+00 : f32
    %6 = vector.broadcast %cst_12 : f32 to vector<1x18x1x32xf32>
    %c0_13 = arith.constant 0 : index
    %c0_14 = arith.constant 0 : index
    %c17_15 = arith.constant 17 : index
    %c0_16 = arith.constant 0 : index
    %7 = vector.load %arg6[%c0_13, %c0_14, %c17_15, %c0_16] : memref<1x18x18x32xf32, #tpu.memory_space<vmem>>, vector<1x18x1x32xf32>
    tpu.vector_store %arg6[%c0_13, %c0_14, %c17_15, %c0_16], %6 {strides = array<i32>} : memref<1x18x18x32xf32, #tpu.memory_space<vmem>>, vector<1x18x1x32xf32>,
    %c0_17 = arith.constant 0 : index
    %c0_18 = arith.constant 0 : index
    %c0_19 = arith.constant 0 : index
    %c0_20 = arith.constant 0 : index
    %8 = vector.load %arg2[%c0_17, %c0_18, %c0_19, %c0_20] : memref<1x16x16x32xf32, #tpu.memory_space<vmem>>, vector<1x16x16x32xf32>
    %c0_21 = arith.constant 0 : index
    %c1 = arith.constant 1 : index
    %c1_22 = arith.constant 1 : index
    %c0_23 = arith.constant 0 : index
    %9 = vector.load %arg6[%c0_21, %c1, %c1_22, %c0_23] : memref<1x18x18x32xf32, #tpu.memory_space<vmem>>, vector<1x16x16x32xf32>
    tpu.vector_store %arg6[%c0_21, %c1, %c1_22, %c0_23], %8 {strides = array<i32>} : memref<1x18x18x32xf32, #tpu.memory_space<vmem>>, vector<1x16x16x32xf32>,
    %c0_24 = arith.constant 0 : index
    %c0_25 = arith.constant 0 : index
    %c0_26 = arith.constant 0 : index
    %c0_27 = arith.constant 0 : index
    %10 = vector.load %arg6[%c0_24, %c0_25, %c0_26, %c0_27] : memref<1x18x18x32xf32, #tpu.memory_space<vmem>>, vector<1x18x18x32xf32>
    %c0_28 = arith.constant 0 : index
    %c0_29 = arith.constant 0 : index
    %c0_30 = arith.constant 0 : index
    %11 = vector.load %arg3[%c0_28, %c0_29, %c0_30] : memref<3x3x32xf32, #tpu.memory_space<vmem>>, vector<3x3x32xf32>
    %12 = vector.extract_strided_slice %10 {offsets = [0, 0, 0, 0], sizes = [1, 16, 18, 32], strides = [1, 1, 1, 1]} : vector<1x18x18x32xf32> to vector<1x16x18x32xf32>
    %13 = vector.shape_cast %12 : vector<1x16x18x32xf32> to vector<1x4x4x18x32xf32>
    %14 = vector.extract_strided_slice %10 {offsets = [0, 2, 0, 0], sizes = [1, 16, 18, 32], strides = [1, 1, 1, 1]} : vector<1x18x18x32xf32> to vector<1x16x18x32xf32>
    %15 = vector.shape_cast %14 : vector<1x16x18x32xf32> to vector<1x4x4x18x32xf32>
    %cst_31 = arith.constant dense<0.000000e+00> : vector<1x4x18x32xf32>
    %16 = vector.multi_reduction <add>, %13, %cst_31 [2] : vector<1x4x4x18x32xf32> to vector<1x4x18x32xf32>
    %17 = vector.extract_strided_slice %13 {offsets = [0, 0, 0, 0, 0], sizes = [1, 4, 1, 18, 32], strides = [1, 1, 1, 1, 1]} : vector<1x4x4x18x32xf32> to vector<1x4x1x18x32xf32>
    %18 = vector.shape_cast %17 : vector<1x4x1x18x32xf32> to vector<1x4x18x32xf32>
    %19 = arith.subf %16, %18 : vector<1x4x18x32xf32>
    %20 = vector.extract_strided_slice %15 {offsets = [0, 0, 2, 0, 0], sizes = [1, 4, 1, 18, 32], strides = [1, 1, 1, 1, 1]} : vector<1x4x4x18x32xf32> to vector<1x4x1x18x32xf32>
    %21 = vector.shape_cast %20 : vector<1x4x1x18x32xf32> to vector<1x4x18x32xf32>
    %22 = arith.addf %19, %21 : vector<1x4x18x32xf32>
    %23 = vector.extract_strided_slice %13 {offsets = [0, 0, 1, 0, 0], sizes = [1, 4, 1, 18, 32], strides = [1, 1, 1, 1, 1]} : vector<1x4x4x18x32xf32> to vector<1x4x1x18x32xf32>
    %24 = vector.shape_cast %23 : vector<1x4x1x18x32xf32> to vector<1x4x18x32xf32>
    %25 = arith.subf %22, %24 : vector<1x4x18x32xf32>
    %26 = vector.extract_strided_slice %15 {offsets = [0, 0, 3, 0, 0], sizes = [1, 4, 1, 18, 32], strides = [1, 1, 1, 1, 1]} : vector<1x4x4x18x32xf32> to vector<1x4x1x18x32xf32>
    %27 = vector.shape_cast %26 : vector<1x4x1x18x32xf32> to vector<1x4x18x32xf32>
    %28 = arith.addf %25, %27 : vector<1x4x18x32xf32>
    %cst_32 = arith.constant 0.000000e+00 : f32
    %29 = vector.broadcast %cst_32 : f32 to vector<1x4x16x32xf32>
    %30 = vector.extract_strided_slice %16 {offsets = [0, 0, 0, 0], sizes = [1, 4, 16, 32], strides = [1, 1, 1, 1]} : vector<1x4x18x32xf32> to vector<1x4x16x32xf32>
    %31 = vector.extract_strided_slice %11 {offsets = [0, 0, 0], sizes = [1, 1, 32], strides = [1, 1, 1]} : vector<3x3x32xf32> to vector<1x1x32xf32>
    %32 = vector.shape_cast %31 : vector<1x1x32xf32> to vector<32xf32>
    %33 = vector.shape_cast %32 : vector<32xf32> to vector<1x1x1x32xf32>
    %34 = vector.broadcast %33 : vector<1x1x1x32xf32> to vector<1x4x16x32xf32>
    %35 = arith.mulf %30, %34 : vector<1x4x16x32xf32>
    %36 = arith.addf %29, %35 : vector<1x4x16x32xf32>
    %37 = vector.extract_strided_slice %16 {offsets = [0, 0, 1, 0], sizes = [1, 4, 16, 32], strides = [1, 1, 1, 1]} : vector<1x4x18x32xf32> to vector<1x4x16x32xf32>
    %38 = vector.extract_strided_slice %11 {offsets = [0, 1, 0], sizes = [1, 1, 32], strides = [1, 1, 1]} : vector<3x3x32xf32> to vector<1x1x32xf32>
    %39 = vector.shape_cast %38 : vector<1x1x32xf32> to vector<32xf32>
    %40 = vector.shape_cast %39 : vector<32xf32> to vector<1x1x1x32xf32>
    %41 = vector.broadcast %40 : vector<1x1x1x32xf32> to vector<1x4x16x32xf32>
    %42 = arith.mulf %37, %41 : vector<1x4x16x32xf32>
    %43 = arith.addf %36, %42 : vector<1x4x16x32xf32>
    %44 = vector.extract_strided_slice %16 {offsets = [0, 0, 2, 0], sizes = [1, 4, 16, 32], strides = [1, 1, 1, 1]} : vector<1x4x18x32xf32> to vector<1x4x16x32xf32>
    %45 = vector.extract_strided_slice %11 {offsets = [0, 2, 0], sizes = [1, 1, 32], strides = [1, 1, 1]} : vector<3x3x32xf32> to vector<1x1x32xf32>
    %46 = vector.shape_cast %45 : vector<1x1x32xf32> to vector<32xf32>
    %47 = vector.shape_cast %46 : vector<32xf32> to vector<1x1x1x32xf32>
    %48 = vector.broadcast %47 : vector<1x1x1x32xf32> to vector<1x4x16x32xf32>
    %49 = arith.mulf %44, %48 : vector<1x4x16x32xf32>
    %50 = arith.addf %43, %49 : vector<1x4x16x32xf32>
    %51 = vector.extract_strided_slice %22 {offsets = [0, 0, 0, 0], sizes = [1, 4, 16, 32], strides = [1, 1, 1, 1]} : vector<1x4x18x32xf32> to vector<1x4x16x32xf32>
    %52 = vector.extract_strided_slice %11 {offsets = [1, 0, 0], sizes = [1, 1, 32], strides = [1, 1, 1]} : vector<3x3x32xf32> to vector<1x1x32xf32>
    %53 = vector.shape_cast %52 : vector<1x1x32xf32> to vector<32xf32>
    %54 = vector.shape_cast %53 : vector<32xf32> to vector<1x1x1x32xf32>
    %55 = vector.broadcast %54 : vector<1x1x1x32xf32> to vector<1x4x16x32xf32>
    %56 = arith.mulf %51, %55 : vector<1x4x16x32xf32>
    %57 = arith.addf %50, %56 : vector<1x4x16x32xf32>
    %58 = vector.extract_strided_slice %22 {offsets = [0, 0, 1, 0], sizes = [1, 4, 16, 32], strides = [1, 1, 1, 1]} : vector<1x4x18x32xf32> to vector<1x4x16x32xf32>
    %59 = vector.extract_strided_slice %11 {offsets = [1, 1, 0], sizes = [1, 1, 32], strides = [1, 1, 1]} : vector<3x3x32xf32> to vector<1x1x32xf32>
    %60 = vector.shape_cast %59 : vector<1x1x32xf32> to vector<32xf32>
    %61 = vector.shape_cast %60 : vector<32xf32> to vector<1x1x1x32xf32>
    %62 = vector.broadcast %61 : vector<1x1x1x32xf32> to vector<1x4x16x32xf32>
    %63 = arith.mulf %58, %62 : vector<1x4x16x32xf32>
    %64 = arith.addf %57, %63 : vector<1x4x16x32xf32>
    %65 = vector.extract_strided_slice %22 {offsets = [0, 0, 2, 0], sizes = [1, 4, 16, 32], strides = [1, 1, 1, 1]} : vector<1x4x18x32xf32> to vector<1x4x16x32xf32>
    %66 = vector.extract_strided_slice %11 {offsets = [1, 2, 0], sizes = [1, 1, 32], strides = [1, 1, 1]} : vector<3x3x32xf32> to vector<1x1x32xf32>
    %67 = vector.shape_cast %66 : vector<1x1x32xf32> to vector<32xf32>
    %68 = vector.shape_cast %67 : vector<32xf32> to vector<1x1x1x32xf32>
    %69 = vector.broadcast %68 : vector<1x1x1x32xf32> to vector<1x4x16x32xf32>
    %70 = arith.mulf %65, %69 : vector<1x4x16x32xf32>
    %71 = arith.addf %64, %70 : vector<1x4x16x32xf32>
    %72 = vector.extract_strided_slice %28 {offsets = [0, 0, 0, 0], sizes = [1, 4, 16, 32], strides = [1, 1, 1, 1]} : vector<1x4x18x32xf32> to vector<1x4x16x32xf32>
    %73 = vector.extract_strided_slice %11 {offsets = [2, 0, 0], sizes = [1, 1, 32], strides = [1, 1, 1]} : vector<3x3x32xf32> to vector<1x1x32xf32>
    %74 = vector.shape_cast %73 : vector<1x1x32xf32> to vector<32xf32>
    %75 = vector.shape_cast %74 : vector<32xf32> to vector<1x1x1x32xf32>
    %76 = vector.broadcast %75 : vector<1x1x1x32xf32> to vector<1x4x16x32xf32>
    %77 = arith.mulf %72, %76 : vector<1x4x16x32xf32>
    %78 = arith.addf %71, %77 : vector<1x4x16x32xf32>
    %79 = vector.extract_strided_slice %28 {offsets = [0, 0, 1, 0], sizes = [1, 4, 16, 32], strides = [1, 1, 1, 1]} : vector<1x4x18x32xf32> to vector<1x4x16x32xf32>
    %80 = vector.extract_strided_slice %11 {offsets = [2, 1, 0], sizes = [1, 1, 32], strides = [1, 1, 1]} : vector<3x3x32xf32> to vector<1x1x32xf32>
    %81 = vector.shape_cast %80 : vector<1x1x32xf32> to vector<32xf32>
    %82 = vector.shape_cast %81 : vector<32xf32> to vector<1x1x1x32xf32>
    %83 = vector.broadcast %82 : vector<1x1x1x32xf32> to vector<1x4x16x32xf32>
    %84 = arith.mulf %79, %83 : vector<1x4x16x32xf32>
    %85 = arith.addf %78, %84 : vector<1x4x16x32xf32>
    %86 = vector.extract_strided_slice %28 {offsets = [0, 0, 2, 0], sizes = [1, 4, 16, 32], strides = [1, 1, 1, 1]} : vector<1x4x18x32xf32> to vector<1x4x16x32xf32>
    %87 = vector.extract_strided_slice %11 {offsets = [2, 2, 0], sizes = [1, 1, 32], strides = [1, 1, 1]} : vector<3x3x32xf32> to vector<1x1x32xf32>
    %88 = vector.shape_cast %87 : vector<1x1x32xf32> to vector<32xf32>
    %89 = vector.shape_cast %88 : vector<32xf32> to vector<1x1x1x32xf32>
    %90 = vector.broadcast %89 : vector<1x1x1x32xf32> to vector<1x4x16x32xf32>
    %91 = arith.mulf %86, %90 : vector<1x4x16x32xf32>
    %92 = arith.addf %85, %91 : vector<1x4x16x32xf32>
    %93 = vector.shape_cast %92 : vector<1x4x16x32xf32> to vector<1x4x4x4x32xf32>
    %cst_33 = arith.constant dense<0.000000e+00> : vector<1x4x4x32xf32>
    %94 = vector.multi_reduction <add>, %93, %cst_33 [3] : vector<1x4x4x4x32xf32> to vector<1x4x4x32xf32>
    %c0_34 = arith.constant 0 : index
    %c0_35 = arith.constant 0 : index
    %c0_36 = arith.constant 0 : index
    %95 = vector.load %arg4[%c0_34, %c0_35, %c0_36] : memref<1x1x32xf32, #tpu.memory_space<vmem>>, vector<1x1x32xf32>
    %96 = vector.shape_cast %95 : vector<1x1x32xf32> to vector<1x1x1x32xf32>
    %97 = vector.broadcast %96 : vector<1x1x1x32xf32> to vector<1x4x4x32xf32>
    %98 = arith.addf %94, %97 : vector<1x4x4x32xf32>
    %99 = vector.shape_cast %98 : vector<1x4x4x32xf32> to vector<1x4x128xf32>
    %c0_37 = arith.constant 0 : index
    %c0_38 = arith.constant 0 : index
    %c0_39 = arith.constant 0 : index
    %100 = vector.load %arg5[%c0_37, %c0_38, %c0_39] : memref<1x4x128xf32, #tpu.memory_space<vmem>>, vector<1x4x128xf32>
    tpu.vector_store %arg5[%c0_37, %c0_38, %c0_39], %99 {strides = array<i32>} : memref<1x4x128xf32, #tpu.memory_space<vmem>>, vector<1x4x128xf32>,
    return
  }
  func.func @transform_0(%arg0: i32, %arg1: i32) -> (i32, i32, i32, i32) {
    %c0_i32 = arith.constant 0 : i32
    %c0_i32_0 = arith.constant 0 : i32
    %c0_i32_1 = arith.constant 0 : i32
    return %arg0, %c0_i32, %c0_i32_0, %arg1 : i32, i32, i32, i32
  }
  func.func @transform_1(%arg0: i32, %arg1: i32) -> (i32, i32, i32) {
    %c0_i32 = arith.constant 0 : i32
    %c0_i32_0 = arith.constant 0 : i32
    %c0_i32_1 = arith.constant 0 : i32
    return %c0_i32, %c0_i32_0, %arg1 : i32, i32, i32
  }
  func.func @transform_2(%arg0: i32, %arg1: i32) -> (i32, i32, i32) {
    %c0_i32 = arith.constant 0 : i32
    %c0_i32_0 = arith.constant 0 : i32
    %c0_i32_1 = arith.constant 0 : i32
    return %c0_i32, %c0_i32_0, %arg1 : i32, i32, i32
  }
  func.func @transform_3(%arg0: i32, %arg1: i32) -> (i32, i32, i32) {
    %c0_i32 = arith.constant 0 : i32
    %c0_i32_0 = arith.constant 0 : i32
    %c0_i32_1 = arith.constant 0 : i32
    return %arg0, %c0_i32, %c0_i32_0 : i32, i32, i32
  }
}

</mosaic_0001>

<llo_original>
// kernel: tpu_custom_call.1
$region0: #{tpu_custom_call.1}
  #allocation0 [shape = 'u32[]', space=smem, size = 0x4, offset = 0x4, fixed_abs, tag = 'smem constant byte address 0x4 - core index']
  #allocation1 [shape = 'u32[72,128]{1,0:T(1,128)}', space=vmem, size = 0x9000, scoped, tag = 'internal scratch']
  #allocation2 [shape = 'f32[1,18,18,32]{3,2,1,0:T(8,128)}', space=vmem, size = 0x36000, scoped, tag = 'scratch operand']
  %s0 = inlined_call_operand.hbm [shape: f32[2,16,16,32], index: 0, kind: input, shape index: {}]
  %s1 = inlined_call_operand.hbm [shape: f32[3,3,32], index: 1, kind: input, shape index: {}]
  %s2 = inlined_call_operand.vmem [shape: f32[1,1,32], index: 2, kind: input, shape index: {}]
  %s3 = inlined_call_operand.hbm [shape: f32[2,4,128], index: 3, kind: output, shape index: {}]
  %s4 = sld [smem:[#allocation0]]
  $region53: #{tpu_custom_call.1} parent=0
    _
  %s6 = ssub.s32 1, %s4
  %s7 = scalar_select 0, %s6, %s4
  $region1: #{tpu_custom_call.1} parent=0
    #allocation3 [shape = 'u8[262144]{0}', space=vmem, size = 0x40000, scoped, tag = 'input window, operand 0']
    #allocation4 [shape = 's32[2]{0}', space=sflag, size = 0x8, scoped, tag = 'scoped memory for tpu_custom_call.1']
    #allocation5 [shape = 's32[2]{0}', space=sflag, size = 0x8, scoped, tag = 'scoped memory for tpu_custom_call.1']
    #allocation6 [shape = 'u8[6144]{0}', space=vmem, size = 0x1800, scoped, tag = 'input window, operand 1, single buffered']
    #allocation7 [shape = 's32[1]{0}', space=sflag, size = 0x4, scoped, tag = 'scoped memory for tpu_custom_call.1']
    #allocation8 [shape = 'u8[4096]{0}', space=vmem, size = 0x1000, scoped, tag = 'output window, operand 0']
    %8 = vsyncpa [#allocation4], 0
    %s9 = scalar_lea.sflag [#allocation4], 1
    %10 = vsyncpa %s9, 0
    %11 = vsyncpa [#allocation7], 0
    %12 = vsyncpa [#allocation5], 0
    %s13 = scalar_lea.sflag [#allocation5], 1
    %14 = vsyncpa %s13, 0
    loop: start=0, step=1, limit=4
    $region2: #{tpu_custom_call.1} parent=1 // loop_pre_header
      _
    $region3: #{tpu_custom_call.1} parent=1 // loop_header
      %s16 = sphi 0, %s20
      %p17 = scmp.ge.s32.totalorder %s16, 4
      %s23 = sphi 0, %s35
      %s24 = sphi 0, %s31
      %s25 = sphi 0, %s23
      %s26 = sphi 0, %s24
      %s27 = sphi 0, %s25
      %s28 = sphi 0, %s26
      %s40 = sphi 0, %s42
      %s43 = sphi 0, %s40
      %s44 = sphi 0, %s43
      %s60 = sphi 0, %s44
      %s66 = sphi 0, %s68
      %s69 = sphi 0, %s66
      %s70 = sphi 0, %s69
      %s86 = sphi 0, %s70
      %s92 = sphi 0, %s94
      %s95 = sphi 0, %s92
      %s96 = sphi 0, %s95
      %s112 = sphi 0, %s96
      %s118 = sphi 0, %s120
      %s121 = sphi 0, %s118
      %s122 = sphi 0, %s121
      %s138 = sphi 0, %s122
    $region4: #{tpu_custom_call.1} parent=1 // loop_header_branch
      %19 = sbr.rel (%p17) target = $region8
    $region5: #{tpu_custom_call.1} parent=1 // loop_body
      %s21 = ssub.s32 %s16, 1
      %s22 = ssub.s32 %s16, 2
      %s29 = sadd.s32 1, %s24
      %p30 = scmp.ge.s32.totalorder %s29, 1
      %s31 = scalar_select %p30, 0, %s29
      %s32 = sadd.s32 1, %s23
      %s33 = scalar_select %p30, %s32, %s23
      %p34 = scmp.ge.s32.totalorder %s33, 2
      %s35 = scalar_select %p34, 0, %s33
      %s36 = ssub.s32 %s23, %s35
      %s37 = ssub.s32 %s24, %s31
      %s38 = sor.u32 %s36, %s37
      %p39 = scmp.eq.s32.totalorder %s38, 0
      %s41 = sadd.s32 %s40, 1
      %s42 = scalar_select %p39, %s40, %s41
      %p45 = pneg %p39
      %p46 = scmp.eq.s32.totalorder %s16, 1
      %p47 = por %p45, %p46
      %p48 = scmp.ne.s32.totalorder %s40, %s43
      %p49 = scmp.eq.s32.totalorder %s16, 0
      %p50 = por %p48, %p49
      %p51 = scmp.ne.s32.totalorder %s40, %s43
      %p52 = scmp.eq.s32.totalorder %s21, 1
      %p53 = por %p51, %p52
      %p54 = scmp.ne.s32.totalorder %s43, %s44
      %p55 = scmp.eq.s32.totalorder %s21, 0
      %p56 = por %p54, %p55
      %p57 = scmp.ne.s32.totalorder %s43, %s44
      %p58 = scmp.eq.s32.totalorder %s22, 1
      %p59 = por %p57, %p58
      %p61 = scmp.ne.s32.totalorder %s44, %s60
      %p62 = scmp.eq.s32.totalorder %s22, 0
      %p63 = por %p61, %p62
      %s64 = ssub.s32 %s24, %s31
      %p65 = scmp.eq.s32.totalorder %s64, 0
      %s67 = sadd.s32 %s66, 1
      %s68 = scalar_select %p65, %s66, %s67
      %p71 = pneg %p65
      %p72 = scmp.eq.s32.totalorder %s16, 1
      %p73 = por %p71, %p72
      %p74 = scmp.ne.s32.totalorder %s66, %s69
      %p75 = scmp.eq.s32.totalorder %s16, 0
      %p76 = por %p74, %p75
      %p77 = scmp.ne.s32.totalorder %s66, %s69
      %p78 = scmp.eq.s32.totalorder %s21, 1
      %p79 = por %p77, %p78
      %p80 = scmp.ne.s32.totalorder %s69, %s70
      %p81 = scmp.eq.s32.totalorder %s21, 0
      %p82 = por %p80, %p81
      %p83 = scmp.ne.s32.totalorder %s69, %s70
      %p84 = scmp.eq.s32.totalorder %s22, 1
      %p85 = por %p83, %p84
      %p87 = scmp.ne.s32.totalorder %s70, %s86
      %p88 = scmp.eq.s32.totalorder %s22, 0
      %p89 = por %p87, %p88
      %s90 = ssub.s32 %s24, %s31
      %p91 = scmp.eq.s32.totalorder %s90, 0
      %s93 = sadd.s32 %s92, 1
      %s94 = scalar_select %p91, %s92, %s93
      %p97 = pneg %p91
      %p98 = scmp.eq.s32.totalorder %s16, 1
      %p99 = por %p97, %p98
      %p100 = scmp.ne.s32.totalorder %s92, %s95
      %p101 = scmp.eq.s32.totalorder %s16, 0
      %p102 = por %p100, %p101
      %p103 = scmp.ne.s32.totalorder %s92, %s95
      %p104 = scmp.eq.s32.totalorder %s21, 1
      %p105 = por %p103, %p104
      %p106 = scmp.ne.s32.totalorder %s95, %s96
      %p107 = scmp.eq.s32.totalorder %s21, 0
      %p108 = por %p106, %p107
      %p109 = scmp.ne.s32.totalorder %s95, %s96
      %p110 = scmp.eq.s32.totalorder %s22, 1
      %p111 = por %p109, %p110
      %p113 = scmp.ne.s32.totalorder %s96, %s112
      %p114 = scmp.eq.s32.totalorder %s22, 0
      %p115 = por %p113, %p114
      %s116 = ssub.s32 %s23, %s35
      %p117 = scmp.eq.s32.totalorder %s116, 0
      %s119 = sadd.s32 %s118, 1
      %s120 = scalar_select %p117, %s118, %s119
      %p123 = pneg %p117
      %p124 = scmp.eq.s32.totalorder %s16, 1
      %p125 = por %p123, %p124
      %p126 = scmp.ne.s32.totalorder %s118, %s121
      %p127 = scmp.eq.s32.totalorder %s16, 0
      %p128 = por %p126, %p127
      %p129 = scmp.ne.s32.totalorder %s118, %s121
      %p130 = scmp.eq.s32.totalorder %s21, 1
      %p131 = por %p129, %p130
      %p132 = scmp.ne.s32.totalorder %s121, %s122
      %p133 = scmp.eq.s32.totalorder %s21, 0
      %p134 = por %p132, %p133
      %p135 = scmp.ne.s32.totalorder %s121, %s122
      %p136 = scmp.eq.s32.totalorder %s22, 1
      %p137 = por %p135, %p136
      %p139 = scmp.ne.s32.totalorder %s122, %s138
      %p140 = scmp.eq.s32.totalorder %s22, 0
      %p141 = por %p139, %p140
      %p142 = scmp.le.s32.totalorder 1, %s16
      %p143 = scmp.lt.s32.totalorder %s16, 3
      %p144 = pnand %p142, %p143
      %p145 = pneg %p144
      // Predicated region
      $region9: #{tpu_custom_call.1} parent=5 // pred_check
        _
      $region10: #{tpu_custom_call.1} parent=5 // pred_check_branch
        %147 = sbr.rel (%p144) target = $region12
      $region11: #{tpu_custom_call.1} parent=5 // pred_region
        %s148 = ssub.s32 %s16, 1
        // Predicated region
        $region13: #{tpu_custom_call.1} parent=11 // pred_check
          %p149 = pneg %p82
        $region14: #{tpu_custom_call.1} parent=11 // pred_check_branch
          %151 = sbr.rel (%p149) target = $region16
        $region15: #{tpu_custom_call.1} parent=11 // pred_region
          %153 = vsyncadd [#allocation7], 0
          %s154 = smul.addr %s26, 4
          %s155 = scalar_lea.hbm %s1, %s154
          %s156 = sshll.u32 %s155, 4
          %s157 = int_to_ptr.hbm [resolvable:$true] %s156
          %s158 = sshll.u32 [#allocation6], 4
          %s159 = int_to_ptr.vmem [resolvable:$true] %s158
          %164 = dma.hbm_to_vmem [thread:$0]  %s157, 192, %s159, [#allocation7], 64, 64, 4
        $region16: #{tpu_custom_call.1} parent=11 // pred_fallthru
          _
        // Predicated region
        $region17: #{tpu_custom_call.1} parent=11 // pred_check
          %p165 = pneg %p108
        $region18: #{tpu_custom_call.1} parent=11 // pred_check_branch
          %167 = sbr.rel (%p165) target = $region20
        $region19: #{tpu_custom_call.1} parent=11 // pred_region
          %p168 = scmp.lt.s32.totalorder %s26, 0
          %s169 = scalar_select %p168, %s26, 0
          %s170 = scalar_lea.vmem %s2, %s169
        $region20: #{tpu_custom_call.1} parent=11 // pred_fallthru
          _
      $region12: #{tpu_custom_call.1} parent=5 // pred_fallthru
        _
      %p171 = scmp.lt.s32.totalorder %s16, 2
      // Predicated region
      $region21: #{tpu_custom_call.1} parent=5 // pred_check
        %p172 = pneg %p171
      $region22: #{tpu_custom_call.1} parent=5 // pred_check_branch
        %174 = sbr.rel (%p172) target = $region24
      $region23: #{tpu_custom_call.1} parent=5 // pred_region
        // Predicated region
        $region25: #{tpu_custom_call.1} parent=23 // pred_check
          %p175 = pneg %p50
        $region26: #{tpu_custom_call.1} parent=23 // pred_check_branch
          %177 = sbr.rel (%p175) target = $region28
        $region27: #{tpu_custom_call.1} parent=23 // pred_region
          %s178 = sand.u32 %s40, 1
          %s179 = scalar_lea.sflag [#allocation4], %s178
          %s180 = sand.u32 %s40, 1
          %s181 = smul.addr %s180, 256
          %s182 = scalar_lea.vmem [#allocation3], %s181
          %184 = vsyncadd %s179, 0
          %s185 = smul.addr %s23, 32
          %s186 = sadd.s32 %s24, %s185
          %s187 = smul.addr %s186, 8
          %s188 = scalar_lea.hbm %s0, %s187
          %s189 = sshll.u32 %s188, 4
          %s190 = int_to_ptr.hbm [resolvable:$true] %s189
          %s191 = sshll.u32 %s182, 4
          %s192 = int_to_ptr.vmem [resolvable:$true] %s191
          %197 = dma.hbm_to_vmem [thread:$0]  %s190, 4096, %s192, %s179, 128, 128, 8
        $region28: #{tpu_custom_call.1} parent=23 // pred_fallthru
          _
      $region24: #{tpu_custom_call.1} parent=5 // pred_fallthru
        _
      %p198 = scmp.le.s32.totalorder 1, %s16
      %p199 = scmp.lt.s32.totalorder %s16, 3
      %p200 = pnand %p198, %p199
      %p201 = pneg %p200
      // Predicated region
      $region29: #{tpu_custom_call.1} parent=5 // pred_check
        _
      $region30: #{tpu_custom_call.1} parent=5 // pred_check_branch
        %203 = sbr.rel (%p200) target = $region32
      $region31: #{tpu_custom_call.1} parent=5 // pred_region
        %s204 = ssub.s32 %s16, 1
        %s205 = sand.u32 %s43, 1
        %s206 = scalar_lea.sflag [#allocation4], %s205
        %s207 = sand.u32 %s43, 1
        %s208 = smul.addr %s207, 256
        %s209 = scalar_lea.vmem [#allocation3], %s208
        // Predicated region
        $region33: #{tpu_custom_call.1} parent=31 // pred_check
          %p210 = pneg %p56
        $region34: #{tpu_custom_call.1} parent=31 // pred_check_branch
          %212 = sbr.rel (%p210) target = $region36
        $region35: #{tpu_custom_call.1} parent=31 // pred_region
          %214 = dma.done %s206, 4096
        $region36: #{tpu_custom_call.1} parent=31 // pred_fallthru
          _
        // Predicated region
        $region37: #{tpu_custom_call.1} parent=31 // pred_check
          %p215 = pneg %p82
        $region38: #{tpu_custom_call.1} parent=31 // pred_check_branch
          %217 = sbr.rel (%p215) target = $region40
        $region39: #{tpu_custom_call.1} parent=31 // pred_region
          %219 = dma.done [#allocation7], 192
        $region40: #{tpu_custom_call.1} parent=31 // pred_fallthru
          _
        %s220 = sand.u32 %s43, 1
        %s221 = scalar_lea.sflag [#allocation4], %s220
        %s222 = sand.u32 %s43, 1
        %s223 = smul.addr %s222, 256
        %s224 = scalar_lea.vmem [#allocation3], %s223
        %p225 = pneg %p56
        %p226 = pneg %p53
        %p227 = pneg %p82
        %p228 = pneg %p79
        %p229 = scmp.lt.s32.totalorder %s26, 0
        %s230 = scalar_select %p229, %s26, 0
        %s231 = scalar_lea.vmem %s2, %s230
        %p232 = pneg %p108
        %p233 = pneg %p105
        %p234 = pneg %p134
        %p235 = pneg %p131
        %s236 = sand.u32 %s121, 1
        %s237 = scalar_lea.sflag [#allocation5], %s236
        %s238 = sand.u32 %s121, 1
        %s239 = smul.addr %s238, 4
        %s240 = scalar_lea.vmem [#allocation8], %s239
        %p241 = scmp.lt.s32.totalorder %s26, 0
        %s242 = scalar_select %p241, %s26, 0
        %s243 = scalar_lea.vmem %s2, %s242
        %vm244 = vcmask 261120
        %245 = vst.msk [vmem:[#allocation2] sm:$0xff] %vm244, 0.0
        %246 = vst.msk [vmem:[#allocation2 + $0x8] sm:$0xff] %vm244, 0.0
        %vm247 = vcmask 254976
        %248 = vst.msk [vmem:[#allocation2 + $0x10] sm:$0x3] %vm247, 0.0
        %s249 = scalar_lea.vmem [#allocation2], 408
        %250 = vst.msk [vmem:[%s249] sm:$0xff] %vm244, 0.0
        %251 = vst.msk [vmem:[%s249 + $0x8] sm:$0xff] %vm244, 0.0
        %252 = vst.msk [vmem:[%s249 + $0x10] sm:$0x3] %vm247, 0.0
        %vm253 = vcmask 253952
        %254 = vst.msk [vmem:[#allocation2] sm:$0x1] %vm253, 0.0
        %255 = vst.msk [vmem:[#allocation2 + $0x18] sm:$0x1] %vm253, 0.0
        %256 = vst.msk [vmem:[#allocation2 + $0x30] sm:$0x1] %vm253, 0.0
        %257 = vst.msk [vmem:[#allocation2 + $0x48] sm:$0x1] %vm253, 0.0
        %258 = vst.msk [vmem:[#allocation2 + $0x60] sm:$0x1] %vm253, 0.0
        %259 = vst.msk [vmem:[#allocation2 + $0x78] sm:$0x1] %vm253, 0.0
        %260 = vst.msk [vmem:[#allocation2 + $0x90] sm:$0x1] %vm253, 0.0
        %261 = vst.msk [vmem:[#allocation2 + $0xa8] sm:$0x1] %vm253, 0.0
        %262 = vst.msk [vmem:[#allocation2 + $0xc0] sm:$0x1] %vm253, 0.0
        %263 = vst.msk [vmem:[#allocation2 + $0xd8] sm:$0x1] %vm253, 0.0
        %264 = vst.msk [vmem:[#allocation2 + $0xf0] sm:$0x1] %vm253, 0.0
        %265 = vst.msk [vmem:[#allocation2 + $0x108] sm:$0x1] %vm253, 0.0
        %266 = vst.msk [vmem:[#allocation2 + $0x120] sm:$0x1] %vm253, 0.0
        %267 = vst.msk [vmem:[#allocation2 + $0x138] sm:$0x1] %vm253, 0.0
        %268 = vst.msk [vmem:[#allocation2 + $0x150] sm:$0x1] %vm253, 0.0
        %269 = vst.msk [vmem:[#allocation2 + $0x168] sm:$0x1] %vm253, 0.0
        %270 = vst.msk [vmem:[#allocation2 + $0x180] sm:$0x1] %vm253, 0.0
        %271 = vst.msk [vmem:[#allocation2 + $0x198] sm:$0x1] %vm253, 0.0
        %272 = vst.msk [vmem:[#allocation2 + $0x11] sm:$0x1] %vm253, 0.0
        %273 = vst.msk [vmem:[#allocation2 + $0x29] sm:$0x1] %vm253, 0.0
        %274 = vst.msk [vmem:[#allocation2 + $0x41] sm:$0x1] %vm253, 0.0
        %275 = vst.msk [vmem:[#allocation2 + $0x59] sm:$0x1] %vm253, 0.0
        %276 = vst.msk [vmem:[#allocation2 + $0x71] sm:$0x1] %vm253, 0.0
        %277 = vst.msk [vmem:[#allocation2 + $0x89] sm:$0x1] %vm253, 0.0
        %278 = vst.msk [vmem:[#allocation2 + $0xa1] sm:$0x1] %vm253, 0.0
        %279 = vst.msk [vmem:[#allocation2 + $0xb9] sm:$0x1] %vm253, 0.0
        %280 = vst.msk [vmem:[#allocation2 + $0xd1] sm:$0x1] %vm253, 0.0
        %281 = vst.msk [vmem:[#allocation2 + $0xe9] sm:$0x1] %vm253, 0.0
        %282 = vst.msk [vmem:[#allocation2 + $0x101] sm:$0x1] %vm253, 0.0
        %283 = vst.msk [vmem:[#allocation2 + $0x119] sm:$0x1] %vm253, 0.0
        %284 = vst.msk [vmem:[#allocation2 + $0x131] sm:$0x1] %vm253, 0.0
        %285 = vst.msk [vmem:[#allocation2 + $0x149] sm:$0x1] %vm253, 0.0
        %286 = vst.msk [vmem:[#allocation2 + $0x161] sm:$0x1] %vm253, 0.0
        %287 = vst.msk [vmem:[#allocation2 + $0x179] sm:$0x1] %vm253, 0.0
        %288 = vst.msk [vmem:[#allocation2 + $0x191] sm:$0x1] %vm253, 0.0
        %289 = vst.msk [vmem:[#allocation2 + $0x1a9] sm:$0x1] %vm253, 0.0
        %v290 = vld [vmem:[%s209] sm:$0xff]
        %v291 = vld [vmem:[%s209 + $0x8] sm:$0xff]
        %v292 = vld [vmem:[%s209 + $0x10] sm:$0xff]
        %v293 = vld [vmem:[%s209 + $0x18] sm:$0xff]
        %v294 = vld [vmem:[%s209 + $0x20] sm:$0xff]
        %v295 = vld [vmem:[%s209 + $0x28] sm:$0xff]
        %v296 = vld [vmem:[%s209 + $0x30] sm:$0xff]
        %v297 = vld [vmem:[%s209 + $0x38] sm:$0xff]
        %v298 = vld [vmem:[%s209 + $0x40] sm:$0xff]
        %v299 = vld [vmem:[%s209 + $0x48] sm:$0xff]
        %v300 = vld [vmem:[%s209 + $0x50] sm:$0xff]
        %v301 = vld [vmem:[%s209 + $0x58] sm:$0xff]
        %v302 = vld [vmem:[%s209 + $0x60] sm:$0xff]
        %v303 = vld [vmem:[%s209 + $0x68] sm:$0xff]
        %v304 = vld [vmem:[%s209 + $0x70] sm:$0xff]
        %v305 = vld [vmem:[%s209 + $0x78] sm:$0xff]
        %v306 = vld [vmem:[%s209 + $0x80] sm:$0xff]
        %v307 = vld [vmem:[%s209 + $0x88] sm:$0xff]
        %v308 = vld [vmem:[%s209 + $0x90] sm:$0xff]
        %v309 = vld [vmem:[%s209 + $0x98] sm:$0xff]
        %v310 = vld [vmem:[%s209 + $0xa0] sm:$0xff]
        %v311 = vld [vmem:[%s209 + $0xa8] sm:$0xff]
        %v312 = vld [vmem:[%s209 + $0xb0] sm:$0xff]
        %v313 = vld [vmem:[%s209 + $0xb8] sm:$0xff]
        %v314 = vld [vmem:[%s209 + $0xc0] sm:$0xff]
        %v315 = vld [vmem:[%s209 + $0xc8] sm:$0xff]
        %v316 = vld [vmem:[%s209 + $0xd0] sm:$0xff]
        %v317 = vld [vmem:[%s209 + $0xd8] sm:$0xff]
        %v318 = vld [vmem:[%s209 + $0xe0] sm:$0xff]
        %v319 = vld [vmem:[%s209 + $0xe8] sm:$0xff]
        %v320 = vld [vmem:[%s209 + $0xf0] sm:$0xff]
        %v321 = vld [vmem:[%s209 + $0xf8] sm:$0xff]
        %s322 = scalar_lea.vmem [#allocation2], 24
        %323 = vst.msk [vmem:[%s322 + $0x1] sm:$0xff] %vm244, %v290
        %324 = vst.msk [vmem:[%s322 + $0x9] sm:$0xff] %vm244, %v291
        %325 = vst.msk [vmem:[%s322 + $0x19] sm:$0xff] %vm244, %v292
        %326 = vst.msk [vmem:[%s322 + $0x21] sm:$0xff] %vm244, %v293
        %327 = vst.msk [vmem:[%s322 + $0x31] sm:$0xff] %vm244, %v294
        %328 = vst.msk [vmem:[%s322 + $0x39] sm:$0xff] %vm244, %v295
        %329 = vst.msk [vmem:[%s322 + $0x49] sm:$0xff] %vm244, %v296
        %330 = vst.msk [vmem:[%s322 + $0x51] sm:$0xff] %vm244, %v297
        %331 = vst.msk [vmem:[%s322 + $0x61] sm:$0xff] %vm244, %v298
        %332 = vst.msk [vmem:[%s322 + $0x69] sm:$0xff] %vm244, %v299
        %333 = vst.msk [vmem:[%s322 + $0x79] sm:$0xff] %vm244, %v300
        %334 = vst.msk [vmem:[%s322 + $0x81] sm:$0xff] %vm244, %v301
        %335 = vst.msk [vmem:[%s322 + $0x91] sm:$0xff] %vm244, %v302
        %336 = vst.msk [vmem:[%s322 + $0x99] sm:$0xff] %vm244, %v303
        %337 = vst.msk [vmem:[%s322 + $0xa9] sm:$0xff] %vm244, %v304
        %338 = vst.msk [vmem:[%s322 + $0xb1] sm:$0xff] %vm244, %v305
        %339 = vst.msk [vmem:[%s322 + $0xc1] sm:$0xff] %vm244, %v306
        %340 = vst.msk [vmem:[%s322 + $0xc9] sm:$0xff] %vm244, %v307
        %341 = vst.msk [vmem:[%s322 + $0xd9] sm:$0xff] %vm244, %v308
        %342 = vst.msk [vmem:[%s322 + $0xe1] sm:$0xff] %vm244, %v309
        %343 = vst.msk [vmem:[%s322 + $0xf1] sm:$0xff] %vm244, %v310
        %344 = vst.msk [vmem:[%s322 + $0xf9] sm:$0xff] %vm244, %v311
        %345 = vst.msk [vmem:[%s322 + $0x109] sm:$0xff] %vm244, %v312
        %346 = vst.msk [vmem:[%s322 + $0x111] sm:$0xff] %vm244, %v313
        %347 = vst.msk [vmem:[%s322 + $0x121] sm:$0xff] %vm244, %v314
        %348 = vst.msk [vmem:[%s322 + $0x129] sm:$0xff] %vm244, %v315
        %349 = vst.msk [vmem:[%s322 + $0x139] sm:$0xff] %vm244, %v316
        %350 = vst.msk [vmem:[%s322 + $0x141] sm:$0xff] %vm244, %v317
        %351 = vst.msk [vmem:[%s322 + $0x151] sm:$0xff] %vm244, %v318
        %352 = vst.msk [vmem:[%s322 + $0x159] sm:$0xff] %vm244, %v319
        %353 = vst.msk [vmem:[%s322 + $0x169] sm:$0xff] %vm244, %v320
        %354 = vst.msk [vmem:[%s322 + $0x171] sm:$0xff] %vm244, %v321
        %v355 = vld [vmem:[#allocation2] sm:$0xff]
        %v356 = vld [vmem:[#allocation2 + $0x8] sm:$0xff]
        %v357 = vld [vmem:[#allocation2 + $0x10] sm:$0x3]
        %v358 = vld [vmem:[#allocation2 + $0x18] sm:$0xff]
        %v359 = vld [vmem:[#allocation2 + $0x20] sm:$0xff]
        %v360 = vld [vmem:[#allocation2 + $0x28] sm:$0x3]
        %v361 = vld [vmem:[#allocation2 + $0x30] sm:$0xff]
        %v362 = vld [vmem:[#allocation2 + $0x38] sm:$0xff]
        %v363 = vld [vmem:[#allocation2 + $0x40] sm:$0x3]
        %v364 = vld [vmem:[#allocation2 + $0x48] sm:$0xff]
        %v365 = vld [vmem:[#allocation2 + $0x50] sm:$0xff]
        %v366 = vld [vmem:[#allocation2 + $0x58] sm:$0x3]
        %v367 = vld [vmem:[#allocation2 + $0x60] sm:$0xff]
        %v368 = vld [vmem:[#allocation2 + $0x68] sm:$0xff]
        %v369 = vld [vmem:[#allocation2 + $0x70] sm:$0x3]
        %v370 = vld [vmem:[#allocation2 + $0x78] sm:$0xff]
        %v371 = vld [vmem:[#allocation2 + $0x80] sm:$0xff]
        %v372 = vld [vmem:[#allocation2 + $0x88] sm:$0x3]
        %v373 = vld [vmem:[#allocation2 + $0x90] sm:$0xff]
        %v374 = vld [vmem:[#allocation2 + $0x98] sm:$0xff]
        %v375 = vld [vmem:[#allocation2 + $0xa0] sm:$0x3]
        %v376 = vld [vmem:[#allocation2 + $0xa8] sm:$0xff]
        %v377 = vld [vmem:[#allocation2 + $0xb0] sm:$0xff]
        %v378 = vld [vmem:[#allocation2 + $0xb8] sm:$0x3]
        %v379 = vld [vmem:[#allocation2 + $0xc0] sm:$0xff]
        %v380 = vld [vmem:[#allocation2 + $0xc8] sm:$0xff]
        %v381 = vld [vmem:[#allocation2 + $0xd0] sm:$0x3]
        %v382 = vld [vmem:[#allocation2 + $0xd8] sm:$0xff]
        %v383 = vld [vmem:[#allocation2 + $0xe0] sm:$0xff]
        %v384 = vld [vmem:[#allocation2 + $0xe8] sm:$0x3]
        %v385 = vld [vmem:[#allocation2 + $0xf0] sm:$0xff]
        %v386 = vld [vmem:[#allocation2 + $0xf8] sm:$0xff]
        %v387 = vld [vmem:[#allocation2 + $0x100] sm:$0x3]
        %v388 = vld [vmem:[#allocation2 + $0x108] sm:$0xff]
        %v389 = vld [vmem:[#allocation2 + $0x110] sm:$0xff]
        %v390 = vld [vmem:[#allocation2 + $0x118] sm:$0x3]
        %v391 = vld [vmem:[#allocation2 + $0x120] sm:$0xff]
        %v392 = vld [vmem:[#allocation2 + $0x128] sm:$0xff]
        %v393 = vld [vmem:[#allocation2 + $0x130] sm:$0x3]
        %v394 = vld [vmem:[#allocation2 + $0x138] sm:$0xff]
        %v395 = vld [vmem:[#allocation2 + $0x140] sm:$0xff]
        %v396 = vld [vmem:[#allocation2 + $0x148] sm:$0x3]
        %v397 = vld [vmem:[#allocation2 + $0x150] sm:$0xff]
        %v398 = vld [vmem:[#allocation2 + $0x158] sm:$0xff]
        %v399 = vld [vmem:[#allocation2 + $0x160] sm:$0x3]
        %v400 = vld [vmem:[#allocation2 + $0x168] sm:$0xff]
        %v401 = vld [vmem:[#allocation2 + $0x170] sm:$0xff]
        %v402 = vld [vmem:[#allocation2 + $0x178] sm:$0x3]
        %v403 = vld [vmem:[#allocation2 + $0x180] sm:$0xff]
        %v404 = vld [vmem:[#allocation2 + $0x188] sm:$0xff]
        %v405 = vld [vmem:[#allocation2 + $0x190] sm:$0x3]
        %v406 = vld [vmem:[#allocation2 + $0x198] sm:$0xff]
        %v407 = vld [vmem:[#allocation2 + $0x1a0] sm:$0xff]
        %v408 = vld [vmem:[#allocation2 + $0x1a8] sm:$0x3]
        %v409 = vld [vmem:[#allocation6] sm:$0x7]
        %v410 = vld [vmem:[#allocation6 + $0x4] sm:$0x7]
        %v411 = vld [vmem:[#allocation6 + $0x8] sm:$0x7]
        %v412 = vsel %vm244, %v355, 0.0
        %v413 = vsel %vm244, %v358, 0.0
        %v414 = vadd.f32 %v412, %v413
        %v415 = vsel %vm244, %v361, 0.0
        %v416 = vadd.f32 %v414, %v415
        %v417 = vsel %vm244, %v364, 0.0
        %v418 = vadd.f32 %v416, %v417
        %v419 = vsel %vm244, %v356, 0.0
        %v420 = vsel %vm244, %v359, 0.0
        %v421 = vadd.f32 %v419, %v420
        %v422 = vsel %vm244, %v362, 0.0
        %v423 = vadd.f32 %v421, %v422
        %v424 = vsel %vm244, %v365, 0.0
        %v425 = vadd.f32 %v423, %v424
        %v426 = vsel %vm247, %v357, 0.0
        %v427 = vsel %vm247, %v360, 0.0
        %v428 = vadd.f32 %v426, %v427
        %v429 = vsel %vm247, %v363, 0.0
        %v430 = vadd.f32 %v428, %v429
        %v431 = vsel %vm247, %v366, 0.0
        %v432 = vadd.f32 %v430, %v431
        %v433 = vsel %vm244, %v367, 0.0
        %v434 = vsel %vm244, %v370, 0.0
        %v435 = vadd.f32 %v433, %v434
        %v436 = vsel %vm244, %v373, 0.0
        %v437 = vadd.f32 %v435, %v436
        %v438 = vsel %vm244, %v376, 0.0
        %v439 = vadd.f32 %v437, %v438
        %v440 = vsel %vm244, %v368, 0.0
        %v441 = vsel %vm244, %v371, 0.0
        %v442 = vadd.f32 %v440, %v441
        %v443 = vsel %vm244, %v374, 0.0
        %v444 = vadd.f32 %v442, %v443
        %v445 = vsel %vm244, %v377, 0.0
        %v446 = vadd.f32 %v444, %v445
        %v447 = vsel %vm247, %v369, 0.0
        %v448 = vsel %vm247, %v372, 0.0
        %v449 = vadd.f32 %v447, %v448
        %v450 = vsel %vm247, %v375, 0.0
        %v451 = vadd.f32 %v449, %v450
        %v452 = vsel %vm247, %v378, 0.0
        %v453 = vadd.f32 %v451, %v452
        %v454 = vsel %vm244, %v379, 0.0
        %v455 = vsel %vm244, %v382, 0.0
        %v456 = vadd.f32 %v454, %v455
        %v457 = vsel %vm244, %v385, 0.0
        %v458 = vadd.f32 %v456, %v457
        %v459 = vsel %vm244, %v388, 0.0
        %v460 = vadd.f32 %v458, %v459
        %v461 = vsel %vm244, %v380, 0.0
        %v462 = vsel %vm244, %v383, 0.0
        %v463 = vadd.f32 %v461, %v462
        %v464 = vsel %vm244, %v386, 0.0
        %v465 = vadd.f32 %v463, %v464
        %v466 = vsel %vm244, %v389, 0.0
        %v467 = vadd.f32 %v465, %v466
        %v468 = vsel %vm247, %v381, 0.0
        %v469 = vsel %vm247, %v384, 0.0
        %v470 = vadd.f32 %v468, %v469
        %v471 = vsel %vm247, %v387, 0.0
        %v472 = vadd.f32 %v470, %v471
        %v473 = vsel %vm247, %v390, 0.0
        %v474 = vadd.f32 %v472, %v473
        %v475 = vsel %vm244, %v391, 0.0
        %v476 = vsel %vm244, %v394, 0.0
        %v477 = vadd.f32 %v475, %v476
        %v478 = vsel %vm244, %v397, 0.0
        %v479 = vadd.f32 %v477, %v478
        %v480 = vsel %vm244, %v400, 0.0
        %v481 = vadd.f32 %v479, %v480
        %v482 = vsel %vm244, %v392, 0.0
        %v483 = vsel %vm244, %v395, 0.0
        %v484 = vadd.f32 %v482, %v483
        %v485 = vsel %vm244, %v398, 0.0
        %v486 = vadd.f32 %v484, %v485
        %v487 = vsel %vm244, %v401, 0.0
        %v488 = vadd.f32 %v486, %v487
        %v489 = vsel %vm247, %v393, 0.0
        %v490 = vsel %vm247, %v396, 0.0
        %v491 = vadd.f32 %v489, %v490
        %v492 = vsel %vm247, %v399, 0.0
        %v493 = vadd.f32 %v491, %v492
        %v494 = vsel %vm247, %v402, 0.0
        %v495 = vadd.f32 %v493, %v494
        %v496 = vsub.f32 %v418, %v355
        %v497 = vsub.f32 %v425, %v356
        %v498 = vsub.f32 %v432, %v357
        %v499 = vsub.f32 %v439, %v367
        %v500 = vsub.f32 %v446, %v368
        %v501 = vsub.f32 %v453, %v369
        %v502 = vsub.f32 %v460, %v379
        %v503 = vsub.f32 %v467, %v380
        %v504 = vsub.f32 %v474, %v381
        %v505 = vsub.f32 %v481, %v391
        %v506 = vsub.f32 %v488, %v392
        %v507 = vsub.f32 %v495, %v393
        %v508 = vadd.f32 %v496, %v367
        %v509 = vadd.f32 %v497, %v368
        %v510 = vadd.f32 %v498, %v369
        %v511 = vadd.f32 %v499, %v379
        %v512 = vadd.f32 %v500, %v380
        %v513 = vadd.f32 %v501, %v381
        %v514 = vadd.f32 %v502, %v391
        %v515 = vadd.f32 %v503, %v392
        %v516 = vadd.f32 %v504, %v393
        %v517 = vadd.f32 %v505, %v403
        %v518 = vadd.f32 %v506, %v404
        %v519 = vadd.f32 %v507, %v405
        %v520 = vsub.f32 %v508, %v358
        %v521 = vsub.f32 %v509, %v359
        %v522 = vsub.f32 %v510, %v360
        %v523 = vsub.f32 %v511, %v370
        %v524 = vsub.f32 %v512, %v371
        %v525 = vsub.f32 %v513, %v372
        %v526 = vsub.f32 %v514, %v382
        %v527 = vsub.f32 %v515, %v383
        %v528 = vsub.f32 %v516, %v384
        %v529 = vsub.f32 %v517, %v394
        %v530 = vsub.f32 %v518, %v395
        %v531 = vsub.f32 %v519, %v396
        %v532 = vadd.f32 %v520, %v370
        %v533 = vadd.f32 %v521, %v371
        %v534 = vadd.f32 %v522, %v372
        %v535 = vadd.f32 %v523, %v382
        %v536 = vadd.f32 %v524, %v383
        %v537 = vadd.f32 %v525, %v384
        %v538 = vadd.f32 %v526, %v394
        %v539 = vadd.f32 %v527, %v395
        %v540 = vadd.f32 %v528, %v396
        %v541 = vadd.f32 %v529, %v406
        %v542 = vadd.f32 %v530, %v407
        %v543 = vadd.f32 %v531, %v408
        %v544 = vperm.slane %v409, 0
        %v545 = vmul.f32 %v418, %v544
        %v546 = vmul.f32 %v425, %v544
        %v547 = vmul.f32 %v439, %v544
        %v548 = vmul.f32 %v446, %v544
        %v549 = vmul.f32 %v460, %v544
        %v550 = vmul.f32 %v467, %v544
        %v551 = vmul.f32 %v481, %v544
        %v552 = vmul.f32 %v488, %v544
        %v553 = vadd.f32 %v545, 0.0
        %v554 = vadd.f32 %v546, 0.0
        %v555 = vadd.f32 %v547, 0.0
        %v556 = vadd.f32 %v548, 0.0
        %v557 = vadd.f32 %v549, 0.0
        %v558 = vadd.f32 %v550, 0.0
        %v559 = vadd.f32 %v551, 0.0
        %v560 = vadd.f32 %v552, 0.0
        %v561 = vperm.slane %v409, 1
        %v562 = vmul.f32 %v418, %v561
        %v563 = vmul.f32 %v425, %v561
        %v564 = vmul.f32 %v432, %v561
        %v565 = vmul.f32 %v439, %v561
        %v566 = vmul.f32 %v446, %v561
        %v567 = vmul.f32 %v453, %v561
        %v568 = vmul.f32 %v460, %v561
        %v569 = vmul.f32 %v467, %v561
        %v570 = vmul.f32 %v474, %v561
        %v571 = vmul.f32 %v481, %v561
        %v572 = vmul.f32 %v488, %v561
        %v573 = vmul.f32 %v495, %v561
        %vm586 = vcmask 1046528
        %v587 = vrot.slane %v562, 1
        %v588 = vrot.slane %v563, 1
        %v589 = vsel %vm586, %v587, %v588
        %v590 = vrot.slane %v564, 1
        %v591 = vsel %vm586, %v588, %v590
        %v592 = vrot.slane %v565, 1
        %v593 = vrot.slane %v566, 1
        %v594 = vsel %vm586, %v592, %v593
        %v595 = vrot.slane %v567, 1
        %v596 = vsel %vm586, %v593, %v595
        %v597 = vrot.slane %v568, 1
        %v598 = vrot.slane %v569, 1
        %v599 = vsel %vm586, %v597, %v598
        %v600 = vrot.slane %v570, 1
        %v601 = vsel %vm586, %v598, %v600
        %v602 = vrot.slane %v571, 1
        %v603 = vrot.slane %v572, 1
        %v604 = vsel %vm586, %v602, %v603
        %v605 = vrot.slane %v573, 1
        %v606 = vsel %vm586, %v603, %v605
        %v615 = vadd.f32 %v553, %v589
        %v616 = vadd.f32 %v554, %v591
        %v617 = vadd.f32 %v555, %v594
        %v618 = vadd.f32 %v556, %v596
        %v619 = vadd.f32 %v557, %v599
        %v620 = vadd.f32 %v558, %v601
        %v621 = vadd.f32 %v559, %v604
        %v622 = vadd.f32 %v560, %v606
        %v623 = vperm.slane %v409, 2
        %v624 = vmul.f32 %v418, %v623
        %v625 = vmul.f32 %v425, %v623
        %v626 = vmul.f32 %v432, %v623
        %v627 = vmul.f32 %v439, %v623
        %v628 = vmul.f32 %v446, %v623
        %v629 = vmul.f32 %v453, %v623
        %v630 = vmul.f32 %v460, %v623
        %v631 = vmul.f32 %v467, %v623
        %v632 = vmul.f32 %v474, %v623
        %v633 = vmul.f32 %v481, %v623
        %v634 = vmul.f32 %v488, %v623
        %v635 = vmul.f32 %v495, %v623
        %vm648 = vcmask 1045504
        %v649 = vrot.slane %v624, 2
        %v650 = vrot.slane %v625, 2
        %v651 = vsel %vm648, %v649, %v650
        %v652 = vrot.slane %v626, 2
        %v653 = vsel %vm648, %v650, %v652
        %v654 = vrot.slane %v627, 2
        %v655 = vrot.slane %v628, 2
        %v656 = vsel %vm648, %v654, %v655
        %v657 = vrot.slane %v629, 2
        %v658 = vsel %vm648, %v655, %v657
        %v659 = vrot.slane %v630, 2
        %v660 = vrot.slane %v631, 2
        %v661 = vsel %vm648, %v659, %v660
        %v662 = vrot.slane %v632, 2
        %v663 = vsel %vm648, %v660, %v662
        %v664 = vrot.slane %v633, 2
        %v665 = vrot.slane %v634, 2
        %v666 = vsel %vm648, %v664, %v665
        %v667 = vrot.slane %v635, 2
        %v668 = vsel %vm648, %v665, %v667
        %v677 = vadd.f32 %v615, %v651
        %v678 = vadd.f32 %v616, %v653
        %v679 = vadd.f32 %v617, %v656
        %v680 = vadd.f32 %v618, %v658
        %v681 = vadd.f32 %v619, %v661
        %v682 = vadd.f32 %v620, %v663
        %v683 = vadd.f32 %v621, %v666
        %v684 = vadd.f32 %v622, %v668
        %v685 = vperm.slane %v410, 0
        %v686 = vmul.f32 %v508, %v685
        %v687 = vmul.f32 %v509, %v685
        %v688 = vmul.f32 %v511, %v685
        %v689 = vmul.f32 %v512, %v685
        %v690 = vmul.f32 %v514, %v685
        %v691 = vmul.f32 %v515, %v685
        %v692 = vmul.f32 %v517, %v685
        %v693 = vmul.f32 %v518, %v685
        %v694 = vadd.f32 %v677, %v686
        %v695 = vadd.f32 %v678, %v687
        %v696 = vadd.f32 %v679, %v688
        %v697 = vadd.f32 %v680, %v689
        %v698 = vadd.f32 %v681, %v690
        %v699 = vadd.f32 %v682, %v691
        %v700 = vadd.f32 %v683, %v692
        %v701 = vadd.f32 %v684, %v693
        %v702 = vperm.slane %v410, 1
        %v703 = vmul.f32 %v508, %v702
        %v704 = vmul.f32 %v509, %v702
        %v705 = vmul.f32 %v510, %v702
        %v706 = vmul.f32 %v511, %v702
        %v707 = vmul.f32 %v512, %v702
        %v708 = vmul.f32 %v513, %v702
        %v709 = vmul.f32 %v514, %v702
        %v710 = vmul.f32 %v515, %v702
        %v711 = vmul.f32 %v516, %v702
        %v712 = vmul.f32 %v517, %v702
        %v713 = vmul.f32 %v518, %v702
        %v714 = vmul.f32 %v519, %v702
        %v727 = vrot.slane %v703, 1
        %v728 = vrot.slane %v704, 1
        %v729 = vsel %vm586, %v727, %v728
        %v730 = vrot.slane %v705, 1
        %v731 = vsel %vm586, %v728, %v730
        %v732 = vrot.slane %v706, 1
        %v733 = vrot.slane %v707, 1
        %v734 = vsel %vm586, %v732, %v733
        %v735 = vrot.slane %v708, 1
        %v736 = vsel %vm586, %v733, %v735
        %v737 = vrot.slane %v709, 1
        %v738 = vrot.slane %v710, 1
        %v739 = vsel %vm586, %v737, %v738
        %v740 = vrot.slane %v711, 1
        %v741 = vsel %vm586, %v738, %v740
        %v742 = vrot.slane %v712, 1
        %v743 = vrot.slane %v713, 1
        %v744 = vsel %vm586, %v742, %v743
        %v745 = vrot.slane %v714, 1
        %v746 = vsel %vm586, %v743, %v745
        %v755 = vadd.f32 %v694, %v729
        %v756 = vadd.f32 %v695, %v731
        %v757 = vadd.f32 %v696, %v734
        %v758 = vadd.f32 %v697, %v736
        %v759 = vadd.f32 %v698, %v739
        %v760 = vadd.f32 %v699, %v741
        %v761 = vadd.f32 %v700, %v744
        %v762 = vadd.f32 %v701, %v746
        %v763 = vperm.slane %v410, 2
        %v764 = vmul.f32 %v508, %v763
        %v765 = vmul.f32 %v509, %v763
        %v766 = vmul.f32 %v510, %v763
        %v767 = vmul.f32 %v511, %v763
        %v768 = vmul.f32 %v512, %v763
        %v769 = vmul.f32 %v513, %v763
        %v770 = vmul.f32 %v514, %v763
        %v771 = vmul.f32 %v515, %v763
        %v772 = vmul.f32 %v516, %v763
        %v773 = vmul.f32 %v517, %v763
        %v774 = vmul.f32 %v518, %v763
        %v775 = vmul.f32 %v519, %v763
        %v788 = vrot.slane %v764, 2
        %v789 = vrot.slane %v765, 2
        %v790 = vsel %vm648, %v788, %v789
        %v791 = vrot.slane %v766, 2
        %v792 = vsel %vm648, %v789, %v791
        %v793 = vrot.slane %v767, 2
        %v794 = vrot.slane %v768, 2
        %v795 = vsel %vm648, %v793, %v794
        %v796 = vrot.slane %v769, 2
        %v797 = vsel %vm648, %v794, %v796
        %v798 = vrot.slane %v770, 2
        %v799 = vrot.slane %v771, 2
        %v800 = vsel %vm648, %v798, %v799
        %v801 = vrot.slane %v772, 2
        %v802 = vsel %vm648, %v799, %v801
        %v803 = vrot.slane %v773, 2
        %v804 = vrot.slane %v774, 2
        %v805 = vsel %vm648, %v803, %v804
        %v806 = vrot.slane %v775, 2
        %v807 = vsel %vm648, %v804, %v806
        %v816 = vadd.f32 %v755, %v790
        %v817 = vadd.f32 %v756, %v792
        %v818 = vadd.f32 %v757, %v795
        %v819 = vadd.f32 %v758, %v797
        %v820 = vadd.f32 %v759, %v800
        %v821 = vadd.f32 %v760, %v802
        %v822 = vadd.f32 %v761, %v805
        %v823 = vadd.f32 %v762, %v807
        %v824 = vperm.slane %v411, 0
        %v825 = vmul.f32 %v532, %v824
        %v826 = vmul.f32 %v533, %v824
        %v827 = vmul.f32 %v535, %v824
        %v828 = vmul.f32 %v536, %v824
        %v829 = vmul.f32 %v538, %v824
        %v830 = vmul.f32 %v539, %v824
        %v831 = vmul.f32 %v541, %v824
        %v832 = vmul.f32 %v542, %v824
        %v833 = vadd.f32 %v816, %v825
        %v834 = vadd.f32 %v817, %v826
        %v835 = vadd.f32 %v818, %v827
        %v836 = vadd.f32 %v819, %v828
        %v837 = vadd.f32 %v820, %v829
        %v838 = vadd.f32 %v821, %v830
        %v839 = vadd.f32 %v822, %v831
        %v840 = vadd.f32 %v823, %v832
        %v841 = vperm.slane %v411, 1
        %v842 = vmul.f32 %v532, %v841
        %v843 = vmul.f32 %v533, %v841
        %v844 = vmul.f32 %v534, %v841
        %v845 = vmul.f32 %v535, %v841
        %v846 = vmul.f32 %v536, %v841
        %v847 = vmul.f32 %v537, %v841
        %v848 = vmul.f32 %v538, %v841
        %v849 = vmul.f32 %v539, %v841
        %v850 = vmul.f32 %v540, %v841
        %v851 = vmul.f32 %v541, %v841
        %v852 = vmul.f32 %v542, %v841
        %v853 = vmul.f32 %v543, %v841
        %v866 = vrot.slane %v842, 1
        %v867 = vrot.slane %v843, 1
        %v868 = vsel %vm586, %v866, %v867
        %v869 = vrot.slane %v844, 1
        %v870 = vsel %vm586, %v867, %v869
        %v871 = vrot.slane %v845, 1
        %v872 = vrot.slane %v846, 1
        %v873 = vsel %vm586, %v871, %v872
        %v874 = vrot.slane %v847, 1
        %v875 = vsel %vm586, %v872, %v874
        %v876 = vrot.slane %v848, 1
        %v877 = vrot.slane %v849, 1
        %v878 = vsel %vm586, %v876, %v877
        %v879 = vrot.slane %v850, 1
        %v880 = vsel %vm586, %v877, %v879
        %v881 = vrot.slane %v851, 1
        %v882 = vrot.slane %v852, 1
        %v883 = vsel %vm586, %v881, %v882
        %v884 = vrot.slane %v853, 1
        %v885 = vsel %vm586, %v882, %v884
        %v894 = vadd.f32 %v833, %v868
        %v895 = vadd.f32 %v834, %v870
        %v896 = vadd.f32 %v835, %v873
        %v897 = vadd.f32 %v836, %v875
        %v898 = vadd.f32 %v837, %v878
        %v899 = vadd.f32 %v838, %v880
        %v900 = vadd.f32 %v839, %v883
        %v901 = vadd.f32 %v840, %v885
        %v902 = vperm.slane %v411, 2
        %v903 = vmul.f32 %v532, %v902
        %v904 = vmul.f32 %v533, %v902
        %v905 = vmul.f32 %v534, %v902
        %v906 = vmul.f32 %v535, %v902
        %v907 = vmul.f32 %v536, %v902
        %v908 = vmul.f32 %v537, %v902
        %v909 = vmul.f32 %v538, %v902
        %v910 = vmul.f32 %v539, %v902
        %v911 = vmul.f32 %v540, %v902
        %v912 = vmul.f32 %v541, %v902
        %v913 = vmul.f32 %v542, %v902
        %v914 = vmul.f32 %v543, %v902
        %v927 = vrot.slane %v903, 2
        %v928 = vrot.slane %v904, 2
        %v929 = vsel %vm648, %v927, %v928
        %v930 = vrot.slane %v905, 2
        %v931 = vsel %vm648, %v928, %v930
        %v932 = vrot.slane %v906, 2
        %v933 = vrot.slane %v907, 2
        %v934 = vsel %vm648, %v932, %v933
        %v935 = vrot.slane %v908, 2
        %v936 = vsel %vm648, %v933, %v935
        %v937 = vrot.slane %v909, 2
        %v938 = vrot.slane %v910, 2
        %v939 = vsel %vm648, %v937, %v938
        %v940 = vrot.slane %v911, 2
        %v941 = vsel %vm648, %v938, %v940
        %v942 = vrot.slane %v912, 2
        %v943 = vrot.slane %v913, 2
        %v944 = vsel %vm648, %v942, %v943
        %v945 = vrot.slane %v914, 2
        %v946 = vsel %vm648, %v943, %v945
        %v955 = vadd.f32 %v894, %v929
        %v956 = vadd.f32 %v895, %v931
        %v957 = vadd.f32 %v896, %v934
        %v958 = vadd.f32 %v897, %v936
        %v959 = vadd.f32 %v898, %v939
        %v960 = vadd.f32 %v899, %v941
        %v961 = vadd.f32 %v900, %v944
        %v962 = vadd.f32 %v901, %v946
        %v971 = vrot.slane %v955, 4
        %v972 = vrot.slane %v956, 4
        %v973 = vrot.slane %v957, 4
        %v974 = vrot.slane %v958, 4
        %v975 = vrot.slane %v959, 4
        %v976 = vrot.slane %v960, 4
        %v977 = vrot.slane %v961, 4
        %v978 = vrot.slane %v962, 4
        %vm987 = vcmask 257024
        %v988 = vsel %vm987, %v955, 0.0
        %v989 = vrot.slane %v988, 4
        %v990 = vadd.f32 %v988, %v989
        %v991 = vrot.slane %v990, 2
        %v992 = vadd.f32 %v990, %v991
        %v993 = vrot.slane %v992, 1
        %v994 = vadd.f32 %v992, %v993
        %v995 = vsel %vm987, %v971, 0.0
        %v996 = vrot.slane %v995, 4
        %v997 = vadd.f32 %v995, %v996
        %v998 = vrot.slane %v997, 2
        %v999 = vadd.f32 %v997, %v998
        %v1000 = vrot.slane %v999, 1
        %v1001 = vadd.f32 %v999, %v1000
        %v1002 = vsel %vm987, %v956, 0.0
        %v1003 = vrot.slane %v1002, 4
        %v1004 = vadd.f32 %v1002, %v1003
        %v1005 = vrot.slane %v1004, 2
        %v1006 = vadd.f32 %v1004, %v1005
        %v1007 = vrot.slane %v1006, 1
        %v1008 = vadd.f32 %v1006, %v1007
        %v1009 = vsel %vm987, %v972, 0.0
        %v1010 = vrot.slane %v1009, 4
        %v1011 = vadd.f32 %v1009, %v1010
        %v1012 = vrot.slane %v1011, 2
        %v1013 = vadd.f32 %v1011, %v1012
        %v1014 = vrot.slane %v1013, 1
        %v1015 = vadd.f32 %v1013, %v1014
        %v1016 = vsel %vm987, %v957, 0.0
        %v1017 = vrot.slane %v1016, 4
        %v1018 = vadd.f32 %v1016, %v1017
        %v1019 = vrot.slane %v1018, 2
        %v1020 = vadd.f32 %v1018, %v1019
        %v1021 = vrot.slane %v1020, 1
        %v1022 = vadd.f32 %v1020, %v1021
        %v1023 = vsel %vm987, %v973, 0.0
        %v1024 = vrot.slane %v1023, 4
        %v1025 = vadd.f32 %v1023, %v1024
        %v1026 = vrot.slane %v1025, 2
        %v1027 = vadd.f32 %v1025, %v1026
        %v1028 = vrot.slane %v1027, 1
        %v1029 = vadd.f32 %v1027, %v1028
        %v1030 = vsel %vm987, %v958, 0.0
        %v1031 = vrot.slane %v1030, 4
        %v1032 = vadd.f32 %v1030, %v1031
        %v1033 = vrot.slane %v1032, 2
        %v1034 = vadd.f32 %v1032, %v1033
        %v1035 = vrot.slane %v1034, 1
        %v1036 = vadd.f32 %v1034, %v1035
        %v1037 = vsel %vm987, %v974, 0.0
        %v1038 = vrot.slane %v1037, 4
        %v1039 = vadd.f32 %v1037, %v1038
        %v1040 = vrot.slane %v1039, 2
        %v1041 = vadd.f32 %v1039, %v1040
        %v1042 = vrot.slane %v1041, 1
        %v1043 = vadd.f32 %v1041, %v1042
        %v1044 = vsel %vm987, %v959, 0.0
        %v1045 = vrot.slane %v1044, 4
        %v1046 = vadd.f32 %v1044, %v1045
        %v1047 = vrot.slane %v1046, 2
        %v1048 = vadd.f32 %v1046, %v1047
        %v1049 = vrot.slane %v1048, 1
        %v1050 = vadd.f32 %v1048, %v1049
        %v1051 = vsel %vm987, %v975, 0.0
        %v1052 = vrot.slane %v1051, 4
        %v1053 = vadd.f32 %v1051, %v1052
        %v1054 = vrot.slane %v1053, 2
        %v1055 = vadd.f32 %v1053, %v1054
        %v1056 = vrot.slane %v1055, 1
        %v1057 = vadd.f32 %v1055, %v1056
        %v1058 = vsel %vm987, %v960, 0.0
        %v1059 = vrot.slane %v1058, 4
        %v1060 = vadd.f32 %v1058, %v1059
        %v1061 = vrot.slane %v1060, 2
        %v1062 = vadd.f32 %v1060, %v1061
        %v1063 = vrot.slane %v1062, 1
        %v1064 = vadd.f32 %v1062, %v1063
        %v1065 = vsel %vm987, %v976, 0.0
        %v1066 = vrot.slane %v1065, 4
        %v1067 = vadd.f32 %v1065, %v1066
        %v1068 = vrot.slane %v1067, 2
        %v1069 = vadd.f32 %v1067, %v1068
        %v1070 = vrot.slane %v1069, 1
        %v1071 = vadd.f32 %v1069, %v1070
        %v1072 = vsel %vm987, %v961, 0.0
        %v1073 = vrot.slane %v1072, 4
        %v1074 = vadd.f32 %v1072, %v1073
        %v1075 = vrot.slane %v1074, 2
        %v1076 = vadd.f32 %v1074, %v1075
        %v1077 = vrot.slane %v1076, 1
        %v1078 = vadd.f32 %v1076, %v1077
        %v1079 = vsel %vm987, %v977, 0.0
        %v1080 = vrot.slane %v1079, 4
        %v1081 = vadd.f32 %v1079, %v1080
        %v1082 = vrot.slane %v1081, 2
        %v1083 = vadd.f32 %v1081, %v1082
        %v1084 = vrot.slane %v1083, 1
        %v1085 = vadd.f32 %v1083, %v1084
        %v1086 = vsel %vm987, %v962, 0.0
        %v1087 = vrot.slane %v1086, 4
        %v1088 = vadd.f32 %v1086, %v1087
        %v1089 = vrot.slane %v1088, 2
        %v1090 = vadd.f32 %v1088, %v1089
        %v1091 = vrot.slane %v1090, 1
        %v1092 = vadd.f32 %v1090, %v1091
        %v1093 = vsel %vm987, %v978, 0.0
        %v1094 = vrot.slane %v1093, 4
        %v1095 = vadd.f32 %v1093, %v1094
        %v1096 = vrot.slane %v1095, 2
        %v1097 = vadd.f32 %v1095, %v1096
        %v1098 = vrot.slane %v1097, 1
        %v1099 = vadd.f32 %v1097, %v1098
        %v1100 = vld [vmem:[%s243] sm:$0x1]
        %v1102 = vperm.slane %v1100, 0
        %v1104 = vadd.f32 %v994, %v1102
        %v1105 = vadd.f32 %v1001, %v1102
        %v1106 = vadd.f32 %v1008, %v1102
        %v1107 = vadd.f32 %v1015, %v1102
        %v1108 = vadd.f32 %v1022, %v1102
        %v1109 = vadd.f32 %v1029, %v1102
        %v1110 = vadd.f32 %v1036, %v1102
        %v1111 = vadd.f32 %v1043, %v1102
        %v1112 = vadd.f32 %v1050, %v1102
        %v1113 = vadd.f32 %v1057, %v1102
        %v1114 = vadd.f32 %v1064, %v1102
        %v1115 = vadd.f32 %v1071, %v1102
        %v1116 = vadd.f32 %v1078, %v1102
        %v1117 = vadd.f32 %v1085, %v1102
        %v1118 = vadd.f32 %v1092, %v1102
        %v1119 = vadd.f32 %v1099, %v1102
        %v1136 = vrot.slane %v1105, 7
        %vm1137 = vcmask 1041409
        %v1138 = vsel %vm1137, %v1136, %v1104
        %v1139 = vrot.slane %v1106, 6
        %vm1140 = vcmask 1042434
        %v1141 = vsel %vm1140, %v1139, %v1138
        %v1142 = vrot.slane %v1107, 5
        %vm1143 = vcmask 1043459
        %v1144 = vsel %vm1143, %v1142, %v1141
        %v1145 = vrot.slane %v1109, 7
        %v1146 = vsel %vm1137, %v1145, %v1108
        %v1147 = vrot.slane %v1110, 6
        %v1148 = vsel %vm1140, %v1147, %v1146
        %v1149 = vrot.slane %v1111, 5
        %v1150 = vsel %vm1143, %v1149, %v1148
        %v1151 = vrot.slane %v1113, 7
        %v1152 = vsel %vm1137, %v1151, %v1112
        %v1153 = vrot.slane %v1114, 6
        %v1154 = vsel %vm1140, %v1153, %v1152
        %v1155 = vrot.slane %v1115, 5
        %v1156 = vsel %vm1143, %v1155, %v1154
        %v1157 = vrot.slane %v1117, 7
        %v1158 = vsel %vm1137, %v1157, %v1116
        %v1159 = vrot.slane %v1118, 6
        %v1160 = vsel %vm1140, %v1159, %v1158
        %v1161 = vrot.slane %v1119, 5
        %v1162 = vsel %vm1143, %v1161, %v1160
        %v1167 = vrot.slane %v1156, 4
        %vm1168 = vcmask 1047556
        %v1169 = vsel %vm1168, %v1167, %v1144
        %v1171 = vunpack.c.l.s4 1983009808
        %v1172 = vunpack.c.0.s8 %v1171
        %v1173 = vperm.slane %v1169, %v1172
        %v1174 = vrot.slane %v1162, 4
        %v1175 = vsel %vm1168, %v1174, %v1150
        %v1177 = vunpack.c.l.s4 1983009808
        %v1178 = vunpack.c.0.s8 %v1177
        %v1179 = vperm.slane %v1175, %v1178
        %v1180 = vrot.slane %v1179, 4
        %v1181 = vsel %vm1168, %v1180, %v1173
        %v1182 = vrot.slane %v1173, 4
        %v1183 = vsel %vm1168, %v1179, %v1182
        %v1185 = vunpack.c.l.s4 1934713408
        %v1186 = vunpack.c.0.s8 %v1185
        %v1187 = vperm.slane %v1181, %v1186
        %v1189 = vunpack.c.l.s4 1934713408
        %v1190 = vunpack.c.0.s8 %v1189
        %v1191 = vperm.slane %v1183, %v1190
        %v1192 = vrot.slane %v1187, 4
        %v1193 = vsel %vm1168, 0.0, %v1192
        %v1194 = vrot.slane %v1191, 4
        %v1195 = vsel %vm1168, 0.0, %v1194
        %1197 = vrot.lane.b32.xlu0 %v1193, 32
        %v1198 = vpop.permute.xlu0 %1197
        %1201 = vrot.lane.b32.xlu0 %v1191, 64
        %v1202 = vpop.permute.xlu0 %1201
        %1205 = vrot.lane.b32.xlu0 %v1195, 96
        %v1206 = vpop.permute.xlu0 %1205
        %v1208 = vsel %vm244, %v1187, %v1198
        %vm1209 = vcmask 523264
        %v1210 = vsel %vm1209, %v1208, %v1202
        %vm1211 = vcmask 785408
        %v1212 = vsel %vm1211, %v1210, %v1206
        %1213 = vst [vmem:[%s240] sm:$0xf] %v1212
        %s1214 = sand.u32 %s121, 1
        %s1215 = scalar_lea.sflag [#allocation5], %s1214
        %s1216 = sand.u32 %s121, 1
        %s1217 = smul.addr %s1216, 4
        %s1218 = scalar_lea.vmem [#allocation8], %s1217
        // Predicated region
        $region41: #{tpu_custom_call.1} parent=31 // pred_check
          %p1219 = pneg %p131
        $region42: #{tpu_custom_call.1} parent=31 // pred_check_branch
          %1221 = sbr.rel (%p1219) target = $region44
        $region43: #{tpu_custom_call.1} parent=31 // pred_region
          %1223 = vsyncadd %s1215, 0
          %s1224 = smul.addr %s25, 4
          %s1225 = scalar_lea.hbm %s3, %s1224
          %s1227 = sshll.u32 %s1218, 4
          %s1228 = int_to_ptr.vmem [resolvable:$true] %s1227
          %s1229 = sshll.u32 %s1225, 4
          %s1230 = int_to_ptr.hbm [resolvable:$true] %s1229
          %1232 = dma.vmem_to_hbm [thread:$0]  %s1228, 64, %s1230, %s1215
        $region44: #{tpu_custom_call.1} parent=31 // pred_fallthru
          _
      $region32: #{tpu_custom_call.1} parent=5 // pred_fallthru
        _
      %p1233 = scmp.le.s32.totalorder 2, %s16
      // Predicated region
      $region45: #{tpu_custom_call.1} parent=5 // pred_check
        %p1234 = pneg %p1233
      $region46: #{tpu_custom_call.1} parent=5 // pred_check_branch
        %1236 = sbr.rel (%p1234) target = $region48
      $region47: #{tpu_custom_call.1} parent=5 // pred_region
        %s1237 = ssub.s32 %s16, 2
        // Predicated region
        $region49: #{tpu_custom_call.1} parent=47 // pred_check
          %p1238 = pneg %p137
        $region50: #{tpu_custom_call.1} parent=47 // pred_check_branch
          %1240 = sbr.rel (%p1238) target = $region52
        $region51: #{tpu_custom_call.1} parent=47 // pred_region
          %s1241 = sand.u32 %s122, 1
          %s1242 = scalar_lea.sflag [#allocation5], %s1241
          %s1243 = sand.u32 %s122, 1
          %s1244 = smul.addr %s1243, 4
          %s1245 = scalar_lea.vmem [#allocation8], %s1244
          %1247 = dma.done %s1242, 64
        $region52: #{tpu_custom_call.1} parent=47 // pred_fallthru
          _
      $region48: #{tpu_custom_call.1} parent=5 // pred_fallthru
        _
    $region6: #{tpu_custom_call.1} parent=1 // loop_footer
      %s20 = sadd.s32 1, %s16
    $region7: #{tpu_custom_call.1} parent=1 // loop_footer_branch
      %15 = sbr.rel target = $region3
    $region8: #{tpu_custom_call.1} parent=1 // loop_exit
      _
    %1248 = vsyncpa [#allocation4], 1
    %s1249 = scalar_lea.sflag [#allocation4], 1
    %1250 = vsyncpa %s1249, 1
    %1251 = vsyncpa [#allocation7], 1
    %1252 = vsyncpa [#allocation5], 1
    %s1253 = scalar_lea.sflag [#allocation5], 1
    %1254 = vsyncpa %s1253, 1

</llo_original>
